<compile_context>
chip_gen: v7x
topology: tpu7x:2x2x1
jax: 0.10.0
libtpu: 0.0.40
codegen_flags: <defaults>
</compile_context>

<pallas_src>
import functools
import math

import jax
import jax.numpy as jnp
from jax import lax
from jax.experimental import pallas as pl
from jax.experimental.pallas import tpu as pltpu


HIDDEN = 64          # module's fixed hidden width
HIDDEN_PAD = 128     # weights padded to one full lane width (zeros are inert)


def _round_up(v, m):
    return ((v + m - 1) // m) * m


def _cdiv(a, b):
    return (a + b - 1) // b


def _gelu_exact(x):
    # torch.nn.functional.gelu default = exact erf-based GELU
    # TODO(synk): v5e-only option — tanh-approx GELU would move the
    # transcendental onto the EUP slot if the VALU ever binds, but it changes
    # numerics vs torch's exact erf, so it stays disabled.
    return 0.5 * x * (1.0 + lax.erf(x * (1.0 / math.sqrt(2.0))))


def mlp_kernel(x_ref, w1_ref, b1_ref, w2_ref, b2_ref, o_ref, *, compute_dtype):
    x = x_ref[...].astype(compute_dtype)
    # fc1: [tm, in_ch] @ [in_ch, 128] + [1, 128]  (MXU, f32 accumulate)
    h = jnp.dot(x, w1_ref[...].astype(compute_dtype),
                preferred_element_type=jnp.float32) + b1_ref[...]
    h = _gelu_exact(h)
    # dropout(p=0.1) omitted — identity in eval/inference mode.
    # fc2: [tm, 128] @ [128, out_ch] + [1, out_ch]
    o = jnp.dot(h.astype(compute_dtype), w2_ref[...].astype(compute_dtype),
                preferred_element_type=jnp.float32) + b2_ref[...]
    o_ref[...] = o.astype(o_ref.dtype)


def _const_spec(shape):
    """Resident (constant-index) operand; single-buffered when supported."""
    idx = lambda i: (0,) * len(shape)
    try:
        return pl.BlockSpec(shape, idx, pipeline_mode=pl.Buffered(1))
    except (TypeError, AttributeError):
        # older jax without pipeline_mode / Buffered — compiler default (2 bufs)
        return pl.BlockSpec(shape, idx)


def _footprint_terms(in_ch, out_ch, x_bytes, o_bytes):
    # resident weights/biases (f32)
    resident = 4 * (in_ch * HIDDEN_PAD + HIDDEN_PAD + HIDDEN_PAD * out_ch + out_ch)
    # per-row: double-buffered x and out tiles + f32 h / o intermediates
    per_row = 2 * in_ch * x_bytes + 2 * out_ch * o_bytes + 4 * (HIDDEN_PAD + out_ch)
    return resident, per_row


def _pick_tm(n_rows, in_ch, out_ch, x_bytes, o_bytes,
             data_budget_bytes=24 * 1024 * 1024, min_steps=8):
    """Row-tile size: multiple of 8, whole footprint under budget, >= min_steps
    grid steps so the pipeline overlaps DMA with compute and v7x can split the
    parallel axis across its two TensorCores."""
    resident, per_row = _footprint_terms(in_ch, out_ch, x_bytes, o_bytes)
    avail = max(data_budget_bytes - 2 * resident, 1 << 20)
    tm = max(8, (avail // per_row) // 8 * 8)
    tm = min(tm, 1024)
    tm = min(tm, max(8, _round_up(_cdiv(max(n_rows, 1), min_steps), 8)))
    return tm


def mlp_forward(x, w1, b1, w2, b2, *, tm=None, use_bf16=False):
    """x: [N, in_ch]; w1: [in_ch, 64]; b1: [1, 64]; w2: [64, out_ch]; b2: [1, out_ch]."""
    N, in_ch = x.shape
    assert w1.shape == (in_ch, HIDDEN)
    out_ch = w2.shape[1]
    out_dtype = x.dtype
    compute_dtype = jnp.bfloat16 if use_bf16 else jnp.float32

    # ---- only the tiny weights/biases are padded (hidden 64 -> 128) --------
    w1_p = jnp.pad(w1.astype(jnp.float32), ((0, 0), (0, HIDDEN_PAD - HIDDEN)))
    b1_p = jnp.pad(b1.astype(jnp.float32), ((0, 0), (0, HIDDEN_PAD - HIDDEN)))
    w2_p = jnp.pad(w2.astype(jnp.float32), ((0, HIDDEN_PAD - HIDDEN), (0, 0)))
    b2_p = b2.astype(jnp.float32)

    x_bytes = x.dtype.itemsize
    o_bytes = jnp.dtype(out_dtype).itemsize

    # ---- row tile: multiple of 8 (or == N for tiny inputs), uneven grid ----
    if tm is None:
        tm = _pick_tm(N, in_ch, out_ch, x_bytes, o_bytes)
    if N < 8:
        tm = max(N, 1)                       # full-dim row block for tiny N
    else:
        tm = max(8, (int(tm) // 8) * 8)
        tm = min(tm, _round_up(N, 8))

    grid = (_cdiv(N, tm),)

    # explicit VMEM ceiling derived from the actual footprint (2x resident in
    # case single-buffering of the weights is unavailable); safe on all gens.
    resident, per_row = _footprint_terms(in_ch, out_ch, x_bytes, o_bytes)
    footprint = 2 * resident + tm * per_row
    vmem_limit = int(min(48 * 1024 * 1024,
                         max(24 * 1024 * 1024, footprint + 4 * 1024 * 1024)))

    cost = pl.CostEstimate(
        flops=2 * N * (in_ch * HIDDEN_PAD + HIDDEN_PAD * out_ch),
        transcendentals=N * HIDDEN_PAD,
        bytes_accessed=(x_bytes * N * in_ch + o_bytes * N * out_ch
                        + 4 * (in_ch * HIDDEN_PAD + HIDDEN_PAD
                               + HIDDEN_PAD * out_ch + out_ch)),
    )

    out = pl.pallas_call(
        functools.partial(mlp_kernel, compute_dtype=compute_dtype),
        out_shape=jax.ShapeDtypeStruct((N, out_ch), out_dtype),
        grid_spec=pltpu.PrefetchScalarGridSpec(
            num_scalar_prefetch=0,
            grid=grid,
            in_specs=[
                pl.BlockSpec((tm, in_ch), lambda i: (i, 0)),   # x row-tile (streamed, true width)
                _const_spec((in_ch, HIDDEN_PAD)),              # w1 (resident)
                _const_spec((1, HIDDEN_PAD)),                  # b1 (resident)
                _const_spec((HIDDEN_PAD, out_ch)),             # w2 (resident)
                _const_spec((1, out_ch)),                      # b2 (resident)
            ],
            out_specs=pl.BlockSpec((tm, out_ch), lambda i: (i, 0)),  # true-width output
        ),
        compiler_params=pltpu.CompilerParams(
            dimension_semantics=("parallel",),
            vmem_limit_bytes=vmem_limit,
        ),
        cost_estimate=cost,
    )(x, w1_p, b1_p, w2_p, b2_p)

    return out


def init_mlp_params(key, in_channels, out_channels, hidden=HIDDEN, dtype=jnp.float32):
    """Deterministic init matching the module's _init_weights:
       xavier_uniform_ on weights, normal(std=1e-6) on biases."""
    k1, k2, k3, k4 = jax.random.split(key, 4)

    def xavier_uniform(k, fan_in, fan_out):
        limit = math.sqrt(6.0 / (fan_in + fan_out))
        # stored as [fan_in, fan_out] (transposed vs torch's [out, in])
        return jax.random.uniform(k, (fan_in, fan_out), dtype, -limit, limit)

    w1 = xavier_uniform(k1, in_channels, hidden)
    b1 = (1e-6 * jax.random.normal(k2, (1, hidden))).astype(dtype)
    w2 = xavier_uniform(k3, hidden, out_channels)
    b2 = (1e-6 * jax.random.normal(k4, (1, out_channels))).astype(dtype)
    return w1, b1, w2, b2


def mlp_reference(x, w1, b1, w2, b2):
    h = x @ w1 + b1
    h = _gelu_exact(h)
    return h @ w2 + b2


if __name__ == "__main__":
    key = jax.random.PRNGKey(0)
    kx, kp = jax.random.split(key)

    # Small shapes consistent with the module: N tokens, in_channels -> 64 -> out_channels
    N, in_channels, out_channels = 8, 32, 16
    x = jax.random.normal(kx, (N, in_channels), jnp.float32)
    w1, b1, w2, b2 = init_mlp_params(kp, in_channels, out_channels)

    out = mlp_forward(x, w1, b1, w2, b2)
    out = jax.block_until_ready(out)
    ref = mlp_reference(x, w1, b1, w2, b2)
    assert out.shape == (N, out_channels)
    assert jnp.allclose(out, ref, atol=1e-5, rtol=1e-5), "mismatch vs reference"

    # ragged, multi-step grid with a partial last block (explicit tm) — checks
    # that Pallas masks the clipped region on writeback instead of wrapper pads
    N2 = 1000
    x2 = jax.random.normal(jax.random.PRNGKey(1), (N2, in_channels), jnp.float32)
    out2 = jax.block_until_ready(mlp_forward(x2, w1, b1, w2, b2, tm=256))
    ref2 = mlp_reference(x2, w1, b1, w2, b2)
    assert out2.shape == (N2, out_channels)
    assert jnp.allclose(out2, ref2, atol=1e-5, rtol=1e-5), "mismatch vs reference (ragged)"

    # same ragged case with the auto tm heuristic (>= 8 grid steps)
    out3 = jax.block_until_ready(mlp_forward(x2, w1, b1, w2, b2))
    assert jnp.allclose(out3, ref2, atol=1e-5, rtol=1e-5), "mismatch vs reference (auto tm)"

    # opt-in bf16 MXU path (looser tolerance — accuracy trade-off vs torch f32)
    out4 = jax.block_until_ready(mlp_forward(x2, w1, b1, w2, b2, use_bf16=True))
    assert jnp.allclose(out4, ref2, atol=5e-2, rtol=5e-2), "mismatch vs reference (bf16)"

    print("KERNEL_OK")
</pallas_src>

<mosaic_0001>
module attributes {stable_mosaic.version = 11 : i64} {
  func.func @mlp_kernel(%arg0: i32, %arg1: memref<8x32xf32, #tpu.memory_space<vmem>>, %arg2: memref<32x128xf32, #tpu.memory_space<vmem>>, %arg3: memref<1x128xf32, #tpu.memory_space<vmem>>, %arg4: memref<128x16xf32, #tpu.memory_space<vmem>>, %arg5: memref<1x16xf32, #tpu.memory_space<vmem>>, %arg6: memref<8x16xf32, #tpu.memory_space<vmem>>) attributes {dimension_semantics = [#tpu.dimension_semantics<parallel>], iteration_bounds = array<i64: 1>, scalar_prefetch = 0 : i64, scratch_operands = 0 : i64, tpu.core_type = #tpu.core_type<tc>, window_params = [{transform_indices = @transform_0, window_bounds = array<i64: 8, 32>}, {pipeline_mode = #tpu.pipeline_mode<synchronous>, transform_indices = @transform_1, window_bounds = array<i64: 32, 128>}, {pipeline_mode = #tpu.pipeline_mode<synchronous>, transform_indices = @transform_2, window_bounds = array<i64: 1, 128>}, {pipeline_mode = #tpu.pipeline_mode<synchronous>, transform_indices = @transform_3, window_bounds = array<i64: 128, 16>}, {pipeline_mode = #tpu.pipeline_mode<synchronous>, transform_indices = @transform_4, window_bounds = array<i64: 1, 16>}, {transform_indices = @transform_5, window_bounds = array<i64: 8, 16>}]} {
    %c0 = arith.constant 0 : index
    %c0_0 = arith.constant 0 : index
    %0 = vector.load %arg1[%c0, %c0_0] : memref<8x32xf32, #tpu.memory_space<vmem>>, vector<8x32xf32>
    %c0_1 = arith.constant 0 : index
    %c0_2 = arith.constant 0 : index
    %1 = vector.load %arg2[%c0_1, %c0_2] : memref<32x128xf32, #tpu.memory_space<vmem>>, vector<32x128xf32>
    %cst = arith.constant dense<0.000000e+00> : vector<8x128xf32>
    %2 = tpu.matmul %0, %1, %cst {dimension_numbers = #tpu.dot_dimension_numbers<[1], [0], [0], [1], [0, 0, 1, 1], [], []>} : vector<8x32xf32>, vector<32x128xf32>, vector<8x128xf32> -> vector<8x128xf32>
    %c0_3 = arith.constant 0 : index
    %c0_4 = arith.constant 0 : index
    %3 = vector.load %arg3[%c0_3, %c0_4] : memref<1x128xf32, #tpu.memory_space<vmem>>, vector<1x128xf32>
    %4 = vector.broadcast %3 : vector<1x128xf32> to vector<8x128xf32>
    %5 = arith.addf %2, %4 : vector<8x128xf32>
    %cst_5 = arith.constant 5.000000e-01 : f32
    %6 = vector.broadcast %cst_5 : f32 to vector<8x128xf32>
    %7 = arith.mulf %6, %5 : vector<8x128xf32>
    %cst_6 = arith.constant 0.707106769 : f32
    %8 = vector.broadcast %cst_6 : f32 to vector<8x128xf32>
    %9 = arith.mulf %5, %8 : vector<8x128xf32>
    %10 = math.erf %9 : vector<8x128xf32>
    %cst_7 = arith.constant 1.000000e+00 : f32
    %11 = vector.broadcast %cst_7 : f32 to vector<8x128xf32>
    %12 = arith.addf %11, %10 : vector<8x128xf32>
    %13 = arith.mulf %7, %12 : vector<8x128xf32>
    %c0_8 = arith.constant 0 : index
    %c0_9 = arith.constant 0 : index
    %14 = vector.load %arg4[%c0_8, %c0_9] : memref<128x16xf32, #tpu.memory_space<vmem>>, vector<128x16xf32>
    %cst_10 = arith.constant dense<0.000000e+00> : vector<8x16xf32>
    %15 = tpu.matmul %13, %14, %cst_10 {dimension_numbers = #tpu.dot_dimension_numbers<[1], [0], [0], [1], [0, 0, 1, 1], [], []>} : vector<8x128xf32>, vector<128x16xf32>, vector<8x16xf32> -> vector<8x16xf32>
    %c0_11 = arith.constant 0 : index
    %c0_12 = arith.constant 0 : index
    %16 = vector.load %arg5[%c0_11, %c0_12] : memref<1x16xf32, #tpu.memory_space<vmem>>, vector<1x16xf32>
    %17 = vector.broadcast %16 : vector<1x16xf32> to vector<8x16xf32>
    %18 = arith.addf %15, %17 : vector<8x16xf32>
    %c0_13 = arith.constant 0 : index
    %c0_14 = arith.constant 0 : index
    %19 = vector.load %arg6[%c0_13, %c0_14] : memref<8x16xf32, #tpu.memory_space<vmem>>, vector<8x16xf32>
    tpu.vector_store %arg6[%c0_13, %c0_14], %18 {strides = array<i32>} : memref<8x16xf32, #tpu.memory_space<vmem>>, vector<8x16xf32>,
    return
  }
  func.func @transform_0(%arg0: i32) -> (i32, i32) {
    %c0_i32 = arith.constant 0 : i32
    %c0_i32_0 = arith.constant 0 : i32
    return %arg0, %c0_i32 : i32, i32
  }
  func.func @transform_1(%arg0: i32) -> (i32, i32) {
    %c0_i32 = arith.constant 0 : i32
    %c0_i32_0 = arith.constant 0 : i32
    %c0_i32_1 = arith.constant 0 : i32
    return %c0_i32, %c0_i32_0 : i32, i32
  }
  func.func @transform_2(%arg0: i32) -> (i32, i32) {
    %c0_i32 = arith.constant 0 : i32
    %c0_i32_0 = arith.constant 0 : i32
    %c0_i32_1 = arith.constant 0 : i32
    return %c0_i32, %c0_i32_0 : i32, i32
  }
  func.func @transform_3(%arg0: i32) -> (i32, i32) {
    %c0_i32 = arith.constant 0 : i32
    %c0_i32_0 = arith.constant 0 : i32
    %c0_i32_1 = arith.constant 0 : i32
    return %c0_i32, %c0_i32_0 : i32, i32
  }
  func.func @transform_4(%arg0: i32) -> (i32, i32) {
    %c0_i32 = arith.constant 0 : i32
    %c0_i32_0 = arith.constant 0 : i32
    %c0_i32_1 = arith.constant 0 : i32
    return %c0_i32, %c0_i32_0 : i32, i32
  }
  func.func @transform_5(%arg0: i32) -> (i32, i32) {
    %c0_i32 = arith.constant 0 : i32
    %c0_i32_0 = arith.constant 0 : i32
    return %arg0, %c0_i32 : i32, i32
  }
}

</mosaic_0001>

<llo_original>
// kernel: tpu_custom_call.1
$region0: #{tpu_custom_call.1}
  #allocation0 [shape = 'u32[]', space=smem, size = 0x4, offset = 0x4, fixed_abs, tag = 'smem constant byte address 0x4 - core index']
  #allocation1 [shape = 'u32[144,128]{1,0:T(1,128)}', space=vmem, size = 0x12000, scoped, tag = 'internal scratch']
  %s0 = inlined_call_operand.vmem [shape: f32[8,32], index: 0, kind: input, shape index: {}]
  %s1 = inlined_call_operand.vmem [shape: f32[32,128], index: 1, kind: input, shape index: {}]
  %s2 = inlined_call_operand.vmem [shape: f32[1,128], index: 2, kind: input, shape index: {}]
  %s3 = inlined_call_operand.vmem [shape: f32[128,16], index: 3, kind: input, shape index: {}]
  %s4 = inlined_call_operand.vmem [shape: f32[1,16], index: 4, kind: input, shape index: {}]
  %s5 = inlined_call_operand.hbm [shape: f32[8,16], index: 5, kind: output, shape index: {}]
  %s6 = sld [smem:[#allocation0]]
  $region30: #{tpu_custom_call.1} parent=0
    _
  %s8 = ssub.s32 1, %s6
  %s9 = scalar_select 0, %s8, %s6
  $region1: #{tpu_custom_call.1} parent=0
    #allocation2 [shape = 'u8[4096]{0}', space=vmem, size = 0x1000, scoped, tag = 'output window, operand 0, single buffered']
    #allocation3 [shape = 's32[1]{0}', space=sflag, size = 0x4, scoped, tag = 'scoped memory for tpu_custom_call.1']
    %10 = vsyncpa [#allocation3], 0
    // Predicated region
    $region2: #{tpu_custom_call.1} parent=1 // pred_check
      _
    $region3: #{tpu_custom_call.1} parent=1 // pred_check_branch
      %12 = sbr.rel (0) target = $region5
    $region4: #{tpu_custom_call.1} parent=1 // pred_region
      _
    $region5: #{tpu_custom_call.1} parent=1 // pred_fallthru
      _
    // Predicated region
    $region6: #{tpu_custom_call.1} parent=1 // pred_check
      _
    $region7: #{tpu_custom_call.1} parent=1 // pred_check_branch
      %14 = sbr.rel (0) target = $region9
    $region8: #{tpu_custom_call.1} parent=1 // pred_region
      _
    $region9: #{tpu_custom_call.1} parent=1 // pred_fallthru
      _
    // Predicated region
    $region10: #{tpu_custom_call.1} parent=1 // pred_check
      _
    $region11: #{tpu_custom_call.1} parent=1 // pred_check_branch
      %16 = sbr.rel (0) target = $region13
    $region12: #{tpu_custom_call.1} parent=1 // pred_region
      _
    $region13: #{tpu_custom_call.1} parent=1 // pred_fallthru
      _
    // Predicated region
    $region14: #{tpu_custom_call.1} parent=1 // pred_check
      _
    $region15: #{tpu_custom_call.1} parent=1 // pred_check_branch
      %18 = sbr.rel (0) target = $region17
    $region16: #{tpu_custom_call.1} parent=1 // pred_region
      _
    $region17: #{tpu_custom_call.1} parent=1 // pred_fallthru
      _
    // Predicated region
    $region18: #{tpu_custom_call.1} parent=1 // pred_check
      _
    $region19: #{tpu_custom_call.1} parent=1 // pred_check_branch
      %20 = sbr.rel (0) target = $region21
    $region20: #{tpu_custom_call.1} parent=1 // pred_region
      _
    $region21: #{tpu_custom_call.1} parent=1 // pred_fallthru
      _
    %v21 = vld [vmem:[%s0] sm:$0xff]
    %v22 = vld [vmem:[%s1] sm:$0xff]
    %v23 = vld [vmem:[%s1 + $0x8] sm:$0xff]
    %v24 = vld [vmem:[%s1 + $0x10] sm:$0xff]
    %v25 = vld [vmem:[%s1 + $0x18] sm:$0xff]
    %v26 = vld [vmem:[%s2] sm:$0x1]
    %v28 = vlaneseq
    %v29 = vshrl.u32 %v28, 7
    %v30 = vsub.s32 0, %v29
    %v31 = vrot.slane %v26, %v30
    %vm33 = vcmask 261120
    %v35 = vsel %vm33, %v21, 0
    %37 = vmatprep.subr.mxu0 0.0
    %38 = vmatpush1.msra.mxu0 %v22
    %39 = vmatprep.subr.mxu0 0.0
    %40 = vmatpush1.msra.mxu0 %v23
    %41 = vmatprep.subr.mxu0 0.0
    %42 = vmatpush1.msra.mxu0 %v24
    %43 = vmatprep.subr.mxu0 0.0
    %44 = vmatpush1.msra.mxu0 %v25
    %45 = vmatprep.subr.mxu0 0.0
    %46 = vmatpush1.msra.mxu0 0.0
    %47 = vmatprep.subr.mxu0 0.0
    %48 = vmatpush1.msra.mxu0 0.0
    %49 = vmatprep.subr.mxu0 0.0
    %50 = vmatpush1.msra.mxu0 0.0
    %51 = vmatprep.subr.mxu0 0.0
    %52 = vmatpush1.msra.mxu0 0.0
    %53 = vmatprep.subr.mxu0 0.0
    %54 = vmatpush1.msra.mxu0 0.0
    %55 = vmatprep.subr.mxu0 0.0
    %56 = vmatpush1.msra.mxu0 0.0
    %57 = vmatprep.subr.mxu0 0.0
    %58 = vmatpush1.msra.mxu0 0.0
    %59 = vmatprep.subr.mxu0 0.0
    %60 = vmatpush1.msra.mxu0 0.0
    %61 = vmatprep.subr.mxu0 0.0
    %62 = vmatpush1.msra.mxu0 0.0
    %63 = vmatprep.subr.mxu0 0.0
    %64 = vmatpush1.msra.mxu0 0.0
    %65 = vmatprep.subr.mxu0 0.0
    %66 = vmatpush1.msra.mxu0 0.0
    %67 = vmatprep.subr.mxu0 0.0
    %68 = vmatpush1.msra.mxu0 0.0
    %69 = vmatprep.subr.mxu0 0.0
    %70 = vmatpush1.msra.mxu0 0.0
    %71 = vmatprep.subr.mxu0 0.0
    %72 = vmatpush1.msra.mxu0 0.0
    %73 = vmatprep.subr.mxu0 0.0
    %74 = vmatpush1.msra.mxu0 0.0
    %75 = vmatprep.subr.mxu0 0.0
    %76 = vmatpush1.msra.mxu0 0.0
    %77 = vmatprep.subr.mxu0 0.0
    %78 = vmatpush1.msra.mxu0 0.0
    %79 = vmatprep.subr.mxu0 0.0
    %80 = vmatpush1.msra.mxu0 0.0
    %81 = vmatprep.subr.mxu0 0.0
    %82 = vmatpush1.msra.mxu0 0.0
    %83 = vmatprep.subr.mxu0 0.0
    %84 = vmatpush1.msra.mxu0 0.0
    %85 = vmatprep.subr.mxu0 0.0
    %86 = vmatpush1.msra.mxu0 0.0
    %87 = vmatprep.subr.mxu0 0.0
    %88 = vmatpush1.msra.mxu0 0.0
    %89 = vmatprep.subr.mxu0 0.0
    %90 = vmatpush1.msra.mxu0 0.0
    %91 = vmatprep.subr.mxu0 0.0
    %92 = vmatpush1.msra.mxu0 0.0
    %93 = vmatprep.subr.mxu0 0.0
    %94 = vmatpush1.msra.mxu0 0.0
    %95 = vmatprep.subr.mxu0 0.0
    %96 = vmatpush1.msra.mxu0 0.0
    %97 = vmatprep.subr.mxu0 0.0
    %98 = vmatpush1.msra.mxu0 0.0
    %99 = vmatprep.subr.mxu0 0.0
    %100 = vmatpush1.msra.mxu0 0.0
    %101 = vmatprep.mubr.f32.mxu0 0.0
    %102 = vmatmul.mubr.f32.gmra.mrb[0].mxu0 %v35
    %v103 = vpop.f32.mrb[0].mxu0
    %v104 = vadd.f32 %v31, %v103
    %v105 = vpop.f32.mrb[0].mxu0
    %106 = vdwg.mxu0
    %v107 = vmul.f32 %v104, 0.5
    %v108 = vmul.f32 %v104, 0.70710677
    %v109 = verf.f32.pop %v108
    %v110 = vadd.f32 %v109, 1.0
    %v111 = vmul.f32 %v107, %v110
    %v112 = vld [vmem:[%s3] sm:$0xff]
    %v113 = vld [vmem:[%s3 + $0x8] sm:$0xff]
    %v114 = vld [vmem:[%s3 + $0x10] sm:$0xff]
    %v115 = vld [vmem:[%s3 + $0x18] sm:$0xff]
    %v116 = vld [vmem:[%s3 + $0x20] sm:$0xff]
    %v117 = vld [vmem:[%s3 + $0x28] sm:$0xff]
    %v118 = vld [vmem:[%s3 + $0x30] sm:$0xff]
    %v119 = vld [vmem:[%s3 + $0x38] sm:$0xff]
    %v120 = vld [vmem:[%s3 + $0x40] sm:$0xff]
    %v121 = vld [vmem:[%s3 + $0x48] sm:$0xff]
    %v122 = vld [vmem:[%s3 + $0x50] sm:$0xff]
    %v123 = vld [vmem:[%s3 + $0x58] sm:$0xff]
    %v124 = vld [vmem:[%s3 + $0x60] sm:$0xff]
    %v125 = vld [vmem:[%s3 + $0x68] sm:$0xff]
    %v126 = vld [vmem:[%s3 + $0x70] sm:$0xff]
    %v127 = vld [vmem:[%s3 + $0x78] sm:$0xff]
    %v128 = vld [vmem:[%s4] sm:$0x1]
    %v130 = vlaneseq
    %v131 = vshrl.u32 %v130, 7
    %v132 = vsub.s32 0, %v131
    %v133 = vrot.slane %v128, %v132
    %135 = vmatprep.subr.mxu0 0.0
    %136 = vmatpush1.msra.mxu0 %v112
    %137 = vmatprep.subr.mxu0 0.0
    %138 = vmatpush1.msra.mxu0 %v113
    %139 = vmatprep.subr.mxu0 0.0
    %140 = vmatpush1.msra.mxu0 %v114
    %141 = vmatprep.subr.mxu0 0.0
    %142 = vmatpush1.msra.mxu0 %v115
    %143 = vmatprep.subr.mxu0 0.0
    %144 = vmatpush1.msra.mxu0 %v116
    %145 = vmatprep.subr.mxu0 0.0
    %146 = vmatpush1.msra.mxu0 %v117
    %147 = vmatprep.subr.mxu0 0.0
    %148 = vmatpush1.msra.mxu0 %v118
    %149 = vmatprep.subr.mxu0 0.0
    %150 = vmatpush1.msra.mxu0 %v119
    %151 = vmatprep.subr.mxu0 0.0
    %152 = vmatpush1.msra.mxu0 %v120
    %153 = vmatprep.subr.mxu0 0.0
    %154 = vmatpush1.msra.mxu0 %v121
    %155 = vmatprep.subr.mxu0 0.0
    %156 = vmatpush1.msra.mxu0 %v122
    %157 = vmatprep.subr.mxu0 0.0
    %158 = vmatpush1.msra.mxu0 %v123
    %159 = vmatprep.subr.mxu0 0.0
    %160 = vmatpush1.msra.mxu0 %v124
    %161 = vmatprep.subr.mxu0 0.0
    %162 = vmatpush1.msra.mxu0 %v125
    %163 = vmatprep.subr.mxu0 0.0
    %164 = vmatpush1.msra.mxu0 %v126
    %165 = vmatprep.subr.mxu0 0.0
    %166 = vmatpush1.msra.mxu0 %v127
    %167 = vmatprep.subr.mxu0 0.0
    %168 = vmatpush1.msra.mxu0 0.0
    %169 = vmatprep.subr.mxu0 0.0
    %170 = vmatpush1.msra.mxu0 0.0
    %171 = vmatprep.subr.mxu0 0.0
    %172 = vmatpush1.msra.mxu0 0.0
    %173 = vmatprep.subr.mxu0 0.0
    %174 = vmatpush1.msra.mxu0 0.0
    %175 = vmatprep.subr.mxu0 0.0
    %176 = vmatpush1.msra.mxu0 0.0
    %177 = vmatprep.subr.mxu0 0.0
    %178 = vmatpush1.msra.mxu0 0.0
    %179 = vmatprep.subr.mxu0 0.0
    %180 = vmatpush1.msra.mxu0 0.0
    %181 = vmatprep.subr.mxu0 0.0
    %182 = vmatpush1.msra.mxu0 0.0
    %183 = vmatprep.subr.mxu0 0.0
    %184 = vmatpush1.msra.mxu0 0.0
    %185 = vmatprep.subr.mxu0 0.0
    %186 = vmatpush1.msra.mxu0 0.0
    %187 = vmatprep.subr.mxu0 0.0
    %188 = vmatpush1.msra.mxu0 0.0
    %189 = vmatprep.subr.mxu0 0.0
    %190 = vmatpush1.msra.mxu0 0.0
    %191 = vmatprep.subr.mxu0 0.0
    %192 = vmatpush1.msra.mxu0 0.0
    %193 = vmatprep.subr.mxu0 0.0
    %194 = vmatpush1.msra.mxu0 0.0
    %195 = vmatprep.subr.mxu0 0.0
    %196 = vmatpush1.msra.mxu0 0.0
    %197 = vmatprep.subr.mxu0 0.0
    %198 = vmatpush1.msra.mxu0 0.0
    %199 = vmatprep.mubr.f32.mxu0 0.0
    %200 = vmatmul.mubr.f32.gmra.mrb[0].mxu0 %v111
    %v201 = vpop.f32.mrb[0].mxu0
    %v202 = vadd.f32 %v133, %v201
    %v203 = vpop.f32.mrb[0].mxu0
    %204 = vdwg.mxu0
    %vm205 = vcmask 130048
    %206 = vst.msk [vmem:[#allocation2] sm:$0xff] %vm205, %v202
    // Predicated region
    $region22: #{tpu_custom_call.1} parent=1 // pred_check
      _
    $region23: #{tpu_custom_call.1} parent=1 // pred_check_branch
      %208 = sbr.rel (0) target = $region25
    $region24: #{tpu_custom_call.1} parent=1 // pred_region
      %s210 = ssub.s32 128, 128
      %211 = vsyncadd [#allocation3], %s210
      %s213 = sshll.u32 [#allocation2], 4
      %s214 = int_to_ptr.vmem [resolvable:$true] %s213
      %216 = dma.vmem_to_hbm [thread:$0]  %s214, 128, %s5, [#allocation3]
    $region25: #{tpu_custom_call.1} parent=1 // pred_fallthru
      _
    // Predicated region
    $region26: #{tpu_custom_call.1} parent=1 // pred_check
      _
    $region27: #{tpu_custom_call.1} parent=1 // pred_check_branch
      %218 = sbr.rel (0) target = $region29
    $region28: #{tpu_custom_call.1} parent=1 // pred_region
      %219 = dma.done [#allocation3], 128
    $region29: #{tpu_custom_call.1} parent=1 // pred_fallthru
      _
    %220 = vsyncpa [#allocation3], 1

</llo_original>
